<compile_context>
chip_gen: v7x
topology: tpu7x:2x2x1
jax: 0.10.0
libtpu: 0.0.40
codegen_flags: <defaults>
</compile_context>

<pallas_src>
import functools

import jax
import jax.numpy as jnp
from jax import lax
from jax.experimental import pallas as pl
from jax.experimental.pallas import tpu as pltpu


def _round_up(x, m):
    return ((x + m - 1) // m) * m


def _pick_tile(total, cap):
    """Largest tile <= cap that divides `total` (total is a multiple of 128)."""
    if total <= cap:
        return total
    for cand in range(cap, 127, -128):
        if total % cand == 0:
            return cand
    return 128


def _conv_bn_relu_kernel(p_ref, w_ref, shift_ref, o_ref, acc_ref):
    """One (tm, tk) x (tk, tn) MXU step; BN shift + ReLU fused on the last k."""
    @pl.when(pl.program_id(2) == 0)
    def _init():
        acc_ref[...] = jnp.zeros_like(acc_ref)

    acc_ref[...] += jnp.dot(p_ref[...], w_ref[...],
                            preferred_element_type=jnp.float32)

    @pl.when(pl.program_id(2) == pl.num_programs(2) - 1)
    def _finalize():
        y = acc_ref[...] + shift_ref[...]          # BN scale already folded in W
        o_ref[...] = jnp.maximum(y, 0.0).astype(o_ref.dtype)


def basic_conv2d(x_nchw, conv_w, gamma, beta, run_mean, run_var,
                 *, stride=1, padding=0, dilation=1, eps=1e-5,
                 tm=512, tn_cap=256, tk_cap=512, input_dtype=None):
    """Fused Conv2d(bias=False) + BatchNorm2d(eval) + ReLU.

    `input_dtype=jnp.bfloat16` halves HBM traffic on v6e/v7x (f32 accumulate is
    kept); default None keeps everything in float32.
    """
    N, Cin, H, W = x_nchw.shape
    Cout, _, KH, KW = conv_w.shape
    OH = (H + 2 * padding - dilation * (KH - 1) - 1) // stride + 1
    OW = (W + 2 * padding - dilation * (KW - 1) - 1) // stride + 1

    # ---- glue: NCHW -> NHWC, pad, im2col ----
    x = jnp.transpose(x_nchw, (0, 2, 3, 1))
    xp = jnp.pad(x, ((0, 0), (padding, padding), (padding, padding), (0, 0)))
    cols = []
    for kh in range(KH):
        for kw in range(KW):
            h0 = kh * dilation
            w0 = kw * dilation
            cols.append(xp[:, h0:h0 + (OH - 1) * stride + 1:stride,
                              w0:w0 + (OW - 1) * stride + 1:stride, :])
    patches = jnp.concatenate(cols, axis=-1) if len(cols) > 1 else cols[0]
    K = KH * KW * Cin
    M = N * OH * OW
    P = patches.reshape(M, K)

    # Conv weight (Cout, Cin, KH, KW) -> (K, Cout) with (kh, kw, cin) row order,
    # with the BatchNorm scale folded into each output column.
    inv_std = gamma / jnp.sqrt(run_var + eps)
    Wm = jnp.transpose(conv_w, (2, 3, 1, 0)).reshape(K, Cout) * inv_std[None, :]
    shift = (beta - run_mean * inv_std).reshape(1, Cout)

    # ---- pad to lane-dense shapes: K, Cout -> multiples of 128 ----
    K_p = _round_up(K, 128)
    Cout_p = _round_up(Cout, 128)

    # ---- tile selection (budgeted to fit v7x's 64 MiB VMEM as well) ----
    tn = _pick_tile(Cout_p, tn_cap)
    tk = _pick_tile(K_p, tk_cap)
    # M tile: large enough to amortize per-step overhead, but keep >= 2 grid
    # steps on the parallel M axis so both v7x TensorCores stay busy.
    tm_eff = max(128, min(tm, _round_up(M, 128)))
    while tm_eff > 128 and pl.cdiv(M, tm_eff) < 2:
        tm_eff = max(128, tm_eff // 2)
    Mp = _round_up(M, tm_eff)

    if input_dtype is not None:
        P = P.astype(input_dtype)
        Wm = Wm.astype(input_dtype)

    P = jnp.pad(P, ((0, Mp - M), (0, K_p - K)))
    Wm = jnp.pad(Wm, ((0, K_p - K), (0, Cout_p - Cout)))
    shift = jnp.pad(shift, ((0, 0), (0, Cout_p - Cout)))

    grid = (Mp // tm_eff, Cout_p // tn, K_p // tk)

    out = pl.pallas_call(
        _conv_bn_relu_kernel,
        out_shape=jax.ShapeDtypeStruct((Mp, Cout_p), x_nchw.dtype),
        grid_spec=pltpu.PrefetchScalarGridSpec(
            num_scalar_prefetch=0,
            grid=grid,
            in_specs=[
                pl.BlockSpec((tm_eff, tk), lambda i, j, k: (i, k)),  # patches
                pl.BlockSpec((tk, tn), lambda i, j, k: (k, j)),      # W * bn_scale
                pl.BlockSpec((1, tn), lambda i, j, k: (0, j)),       # bn shift
            ],
            out_specs=pl.BlockSpec((tm_eff, tn), lambda i, j, k: (i, j)),
            scratch_shapes=[pltpu.VMEM((tm_eff, tn), jnp.float32)],
        ),
        compiler_params=pltpu.CompilerParams(
            dimension_semantics=("parallel", "parallel", "arbitrary"),
            vmem_limit_bytes=48 * 1024 * 1024,
        ),
    )(P, Wm, shift)

    # Padded rows go through BN+ReLU (relu(shift) != 0) and padded output
    # channels are zero; both are sliced off here -- do not drop this slice.
    out = out[:M, :Cout].reshape(N, OH, OW, Cout)
    return jnp.transpose(out, (0, 3, 1, 2))           # back to NCHW


def _reference(x_nchw, conv_w, gamma, beta, run_mean, run_var,
               *, stride=1, padding=0, dilation=1, eps=1e-5):
    y = lax.conv_general_dilated(
        x_nchw, conv_w,
        window_strides=(stride, stride),
        padding=((padding, padding), (padding, padding)),
        rhs_dilation=(dilation, dilation),
        dimension_numbers=("NCHW", "OIHW", "NCHW"))
    s = (gamma / jnp.sqrt(run_var + eps)).reshape(1, -1, 1, 1)
    b = (beta - run_mean * gamma / jnp.sqrt(run_var + eps)).reshape(1, -1, 1, 1)
    return jnp.maximum(y * s + b, 0.0)


if __name__ == "__main__":
    # Small shapes consistent with BasicConv2d(in_planes=4, out_planes=8,
    # kernel_size=3, stride=1, padding=1)
    N, Cin, H, W = 2, 4, 16, 16
    Cout, KH, KW = 8, 3, 3
    stride, padding, dilation = 1, 1, 1

    key = jax.random.PRNGKey(0)
    kx, kw, kg, kb, km, kv = jax.random.split(key, 6)
    x = jax.random.normal(kx, (N, Cin, H, W), dtype=jnp.float32)
    conv_w = jax.random.normal(kw, (Cout, Cin, KH, KW), dtype=jnp.float32) * 0.1
    gamma = jax.random.uniform(kg, (Cout,), dtype=jnp.float32,
                               minval=0.5, maxval=1.5)
    beta = jax.random.normal(kb, (Cout,), dtype=jnp.float32) * 0.1
    run_mean = jax.random.normal(km, (Cout,), dtype=jnp.float32) * 0.1
    run_var = jax.random.uniform(kv, (Cout,), dtype=jnp.float32,
                                 minval=0.5, maxval=1.5)

    fn = jax.jit(functools.partial(basic_conv2d, stride=stride,
                                   padding=padding, dilation=dilation))
    out = fn(x, conv_w, gamma, beta, run_mean, run_var)
    out = jax.block_until_ready(out)

    ref = _reference(x, conv_w, gamma, beta, run_mean, run_var,
                     stride=stride, padding=padding, dilation=dilation)
    assert out.shape == (N, Cout, H, W), out.shape
    assert jnp.allclose(out, ref, atol=1e-4, rtol=1e-4), (
        float(jnp.max(jnp.abs(out - ref))))

    print("KERNEL_OK")
</pallas_src>

<mosaic_0001>
module attributes {stable_mosaic.version = 11 : i64} {
  func.func @_conv_bn_relu_kernel(%arg0: i32, %arg1: i32, %arg2: i32, %arg3: memref<256x128xf32, #tpu.memory_space<vmem>>, %arg4: memref<128x128xf32, #tpu.memory_space<vmem>>, %arg5: memref<1x128xf32, #tpu.memory_space<vmem>>, %arg6: memref<256x128xf32, #tpu.memory_space<vmem>>, %arg7: memref<256x128xf32, #tpu.memory_space<vmem>>) attributes {dimension_semantics = [#tpu.dimension_semantics<parallel>, #tpu.dimension_semantics<parallel>, #tpu.dimension_semantics<arbitrary>], iteration_bounds = array<i64: 2, 1, 1>, scalar_prefetch = 0 : i64, scratch_operands = 1 : i64, tpu.core_type = #tpu.core_type<tc>, window_params = [{transform_indices = @transform_0, window_bounds = array<i64: 256, 128>}, {transform_indices = @transform_1, window_bounds = array<i64: 128, 128>}, {transform_indices = @transform_2, window_bounds = array<i64: 1, 128>}, {transform_indices = @transform_3, window_bounds = array<i64: 256, 128>}]} {
    %c0_i32 = arith.constant 0 : i32
    %0 = arith.cmpi eq, %arg2, %c0_i32 : i32
    %1 = arith.extui %0 : i1 to i32
    %c0_i32_0 = arith.constant 0 : i32
    %2 = arith.cmpi ne, %1, %c0_i32_0 : i32
    scf.if %2 {
      %cst_10 = arith.constant 0.000000e+00 : f32
      %12 = vector.broadcast %cst_10 : f32 to vector<256x128xf32>
      %c0_11 = arith.constant 0 : index
      %c0_12 = arith.constant 0 : index
      %13 = vector.load %arg7[%c0_11, %c0_12] : memref<256x128xf32, #tpu.memory_space<vmem>>, vector<256x128xf32>
      tpu.vector_store %arg7[%c0_11, %c0_12], %12 {strides = array<i32>} : memref<256x128xf32, #tpu.memory_space<vmem>>, vector<256x128xf32>,
    } else {
    }
    %c0 = arith.constant 0 : index
    %c0_1 = arith.constant 0 : index
    %3 = vector.load %arg7[%c0, %c0_1] : memref<256x128xf32, #tpu.memory_space<vmem>>, vector<256x128xf32>
    %c0_2 = arith.constant 0 : index
    %c0_3 = arith.constant 0 : index
    %4 = vector.load %arg3[%c0_2, %c0_3] : memref<256x128xf32, #tpu.memory_space<vmem>>, vector<256x128xf32>
    %c0_4 = arith.constant 0 : index
    %c0_5 = arith.constant 0 : index
    %5 = vector.load %arg4[%c0_4, %c0_5] : memref<128x128xf32, #tpu.memory_space<vmem>>, vector<128x128xf32>
    %cst = arith.constant dense<0.000000e+00> : vector<256x128xf32>
    %6 = tpu.matmul %4, %5, %cst {dimension_numbers = #tpu.dot_dimension_numbers<[1], [0], [0], [1], [0, 0, 1, 1], [], []>} : vector<256x128xf32>, vector<128x128xf32>, vector<256x128xf32> -> vector<256x128xf32>
    %7 = arith.addf %3, %6 : vector<256x128xf32>
    %c0_6 = arith.constant 0 : index
    %c0_7 = arith.constant 0 : index
    %8 = vector.load %arg7[%c0_6, %c0_7] : memref<256x128xf32, #tpu.memory_space<vmem>>, vector<256x128xf32>
    tpu.vector_store %arg7[%c0_6, %c0_7], %7 {strides = array<i32>} : memref<256x128xf32, #tpu.memory_space<vmem>>, vector<256x128xf32>,
    %c0_i32_8 = arith.constant 0 : i32
    %9 = arith.cmpi eq, %arg2, %c0_i32_8 : i32
    %10 = arith.extui %9 : i1 to i32
    %c0_i32_9 = arith.constant 0 : i32
    %11 = arith.cmpi ne, %10, %c0_i32_9 : i32
    scf.if %11 {
      %c0_10 = arith.constant 0 : index
      %c0_11 = arith.constant 0 : index
      %12 = vector.load %arg7[%c0_10, %c0_11] : memref<256x128xf32, #tpu.memory_space<vmem>>, vector<256x128xf32>
      %c0_12 = arith.constant 0 : index
      %c0_13 = arith.constant 0 : index
      %13 = vector.load %arg5[%c0_12, %c0_13] : memref<1x128xf32, #tpu.memory_space<vmem>>, vector<1x128xf32>
      %14 = vector.broadcast %13 : vector<1x128xf32> to vector<256x128xf32>
      %15 = arith.addf %12, %14 : vector<256x128xf32>
      %cst_14 = arith.constant 0.000000e+00 : f32
      %16 = vector.broadcast %cst_14 : f32 to vector<256x128xf32>
      %17 = arith.maximumf %15, %16 : vector<256x128xf32>
      %c0_15 = arith.constant 0 : index
      %c0_16 = arith.constant 0 : index
      %18 = vector.load %arg6[%c0_15, %c0_16] : memref<256x128xf32, #tpu.memory_space<vmem>>, vector<256x128xf32>
      tpu.vector_store %arg6[%c0_15, %c0_16], %17 {strides = array<i32>} : memref<256x128xf32, #tpu.memory_space<vmem>>, vector<256x128xf32>,
    } else {
    }
    return
  }
  func.func @transform_0(%arg0: i32, %arg1: i32, %arg2: i32) -> (i32, i32) {
    %c0_i32 = arith.constant 0 : i32
    return %arg0, %arg2 : i32, i32
  }
  func.func @transform_1(%arg0: i32, %arg1: i32, %arg2: i32) -> (i32, i32) {
    %c0_i32 = arith.constant 0 : i32
    return %arg2, %arg1 : i32, i32
  }
  func.func @transform_2(%arg0: i32, %arg1: i32, %arg2: i32) -> (i32, i32) {
    %c0_i32 = arith.constant 0 : i32
    %c0_i32_0 = arith.constant 0 : i32
    return %c0_i32, %arg1 : i32, i32
  }
  func.func @transform_3(%arg0: i32, %arg1: i32, %arg2: i32) -> (i32, i32) {
    %c0_i32 = arith.constant 0 : i32
    return %arg0, %arg1 : i32, i32
  }
}

</mosaic_0001>

<llo_original>
// kernel: basic_conv2d.1
$region0: #{basic_conv2d.1}
  #allocation0 [shape = 'u32[]', space=smem, size = 0x4, offset = 0x4, fixed_abs, tag = 'smem constant byte address 0x4 - core index']
  #allocation1 [shape = 'u32[144,128]{1,0:T(1,128)}', space=vmem, size = 0x12000, scoped, tag = 'internal scratch']
  #allocation2 [shape = 'f32[256,128]{1,0:T(8,128)}', space=vmem, size = 0x20000, scoped, tag = 'scratch operand']
  %s0 = inlined_call_operand.vmem [shape: f32[512,128], index: 0, kind: input, shape index: {}]
  %s1 = inlined_call_operand.vmem [shape: f32[128,128], index: 1, kind: input, shape index: {}]
  %s2 = inlined_call_operand.vmem [shape: f32[1,128], index: 2, kind: input, shape index: {}]
  %s3 = inlined_call_operand.vmem [shape: f32[512,128], index: 3, kind: output, shape index: {}]
  %s4 = sld [smem:[#allocation0]]
  $region53: #{basic_conv2d.1} parent=0
    _
  %s6 = ssub.s32 1, %s4
  %s7 = scalar_select 0, %s6, %s4
  loop: start=0, step=1, limit=4
  $region2: #{basic_conv2d.1} parent=0 // loop_pre_header
    _
  $region3: #{basic_conv2d.1} parent=0 // loop_header
    %s9 = sphi 0, %s13
    %p10 = scmp.ge.s32.totalorder %s9, 4
    %s16 = sphi 0, %s35
    %s17 = sphi 0, %s31
    %s18 = sphi 0, %s27
    %s19 = sphi 0, %s16
    %s20 = sphi 0, %s17
    %s21 = sphi 0, %s18
    %s22 = sphi 0, %s19
    %s23 = sphi 0, %s20
    %s24 = sphi 0, %s21
    %s40 = sphi 0, %s42
    %s43 = sphi 0, %s40
    %s44 = sphi 0, %s43
    %s60 = sphi 0, %s44
    %s68 = sphi 0, %s70
    %s71 = sphi 0, %s68
    %s72 = sphi 0, %s71
    %s88 = sphi 0, %s72
    %s94 = sphi 0, %s96
    %s97 = sphi 0, %s94
    %s98 = sphi 0, %s97
    %s114 = sphi 0, %s98
    %s122 = sphi 0, %s124
    %s125 = sphi 0, %s122
    %s126 = sphi 0, %s125
    %s142 = sphi 0, %s126
  $region4: #{basic_conv2d.1} parent=0 // loop_header_branch
    %12 = sbr.rel (%p10) target = $region8
  $region5: #{basic_conv2d.1} parent=0 // loop_body
    %s14 = ssub.s32 %s9, 1
    %s15 = ssub.s32 %s9, 2
    %s25 = sadd.s32 1, %s18
    %p26 = scmp.ge.s32.totalorder %s25, 1
    %s27 = scalar_select %p26, 0, %s25
    %s28 = sadd.s32 1, %s17
    %s29 = scalar_select %p26, %s28, %s17
    %p30 = scmp.ge.s32.totalorder %s29, 1
    %s31 = scalar_select %p30, 0, %s29
    %s32 = sadd.s32 1, %s16
    %s33 = scalar_select %p30, %s32, %s16
    %p34 = scmp.ge.s32.totalorder %s33, 2
    %s35 = scalar_select %p34, 0, %s33
    %s36 = ssub.s32 %s16, %s35
    %s37 = ssub.s32 %s18, %s27
    %s38 = sor.u32 %s36, %s37
    %p39 = scmp.eq.s32.totalorder %s38, 0
    %s41 = sadd.s32 %s40, 1
    %s42 = scalar_select %p39, %s40, %s41
    %p45 = pneg %p39
    %p46 = scmp.eq.s32.totalorder %s9, 1
    %p47 = por %p45, %p46
    %p48 = scmp.ne.s32.totalorder %s40, %s43
    %p49 = scmp.eq.s32.totalorder %s9, 0
    %p50 = por %p48, %p49
    %p51 = scmp.ne.s32.totalorder %s40, %s43
    %p52 = scmp.eq.s32.totalorder %s14, 1
    %p53 = por %p51, %p52
    %p54 = scmp.ne.s32.totalorder %s43, %s44
    %p55 = scmp.eq.s32.totalorder %s14, 0
    %p56 = por %p54, %p55
    %p57 = scmp.ne.s32.totalorder %s43, %s44
    %p58 = scmp.eq.s32.totalorder %s15, 1
    %p59 = por %p57, %p58
    %p61 = scmp.ne.s32.totalorder %s44, %s60
    %p62 = scmp.eq.s32.totalorder %s15, 0
    %p63 = por %p61, %p62
    %s64 = ssub.s32 %s18, %s27
    %s65 = ssub.s32 %s17, %s31
    %s66 = sor.u32 %s64, %s65
    %p67 = scmp.eq.s32.totalorder %s66, 0
    %s69 = sadd.s32 %s68, 1
    %s70 = scalar_select %p67, %s68, %s69
    %p73 = pneg %p67
    %p74 = scmp.eq.s32.totalorder %s9, 1
    %p75 = por %p73, %p74
    %p76 = scmp.ne.s32.totalorder %s68, %s71
    %p77 = scmp.eq.s32.totalorder %s9, 0
    %p78 = por %p76, %p77
    %p79 = scmp.ne.s32.totalorder %s68, %s71
    %p80 = scmp.eq.s32.totalorder %s14, 1
    %p81 = por %p79, %p80
    %p82 = scmp.ne.s32.totalorder %s71, %s72
    %p83 = scmp.eq.s32.totalorder %s14, 0
    %p84 = por %p82, %p83
    %p85 = scmp.ne.s32.totalorder %s71, %s72
    %p86 = scmp.eq.s32.totalorder %s15, 1
    %p87 = por %p85, %p86
    %p89 = scmp.ne.s32.totalorder %s72, %s88
    %p90 = scmp.eq.s32.totalorder %s15, 0
    %p91 = por %p89, %p90
    %s92 = ssub.s32 %s17, %s31
    %p93 = scmp.eq.s32.totalorder %s92, 0
    %s95 = sadd.s32 %s94, 1
    %s96 = scalar_select %p93, %s94, %s95
    %p99 = pneg %p93
    %p100 = scmp.eq.s32.totalorder %s9, 1
    %p101 = por %p99, %p100
    %p102 = scmp.ne.s32.totalorder %s94, %s97
    %p103 = scmp.eq.s32.totalorder %s9, 0
    %p104 = por %p102, %p103
    %p105 = scmp.ne.s32.totalorder %s94, %s97
    %p106 = scmp.eq.s32.totalorder %s14, 1
    %p107 = por %p105, %p106
    %p108 = scmp.ne.s32.totalorder %s97, %s98
    %p109 = scmp.eq.s32.totalorder %s14, 0
    %p110 = por %p108, %p109
    %p111 = scmp.ne.s32.totalorder %s97, %s98
    %p112 = scmp.eq.s32.totalorder %s15, 1
    %p113 = por %p111, %p112
    %p115 = scmp.ne.s32.totalorder %s98, %s114
    %p116 = scmp.eq.s32.totalorder %s15, 0
    %p117 = por %p115, %p116
    %s118 = ssub.s32 %s16, %s35
    %s119 = ssub.s32 %s17, %s31
    %s120 = sor.u32 %s118, %s119
    %p121 = scmp.eq.s32.totalorder %s120, 0
    %s123 = sadd.s32 %s122, 1
    %s124 = scalar_select %p121, %s122, %s123
    %p127 = pneg %p121
    %p128 = scmp.eq.s32.totalorder %s9, 1
    %p129 = por %p127, %p128
    %p130 = scmp.ne.s32.totalorder %s122, %s125
    %p131 = scmp.eq.s32.totalorder %s9, 0
    %p132 = por %p130, %p131
    %p133 = scmp.ne.s32.totalorder %s122, %s125
    %p134 = scmp.eq.s32.totalorder %s14, 1
    %p135 = por %p133, %p134
    %p136 = scmp.ne.s32.totalorder %s125, %s126
    %p137 = scmp.eq.s32.totalorder %s14, 0
    %p138 = por %p136, %p137
    %p139 = scmp.ne.s32.totalorder %s125, %s126
    %p140 = scmp.eq.s32.totalorder %s15, 1
    %p141 = por %p139, %p140
    %p143 = scmp.ne.s32.totalorder %s126, %s142
    %p144 = scmp.eq.s32.totalorder %s15, 0
    %p145 = por %p143, %p144
    %p146 = scmp.le.s32.totalorder 1, %s9
    %p147 = scmp.lt.s32.totalorder %s9, 3
    %p148 = pnand %p146, %p147
    %p149 = pneg %p148
    // Predicated region
    $region9: #{basic_conv2d.1} parent=5 // pred_check
      _
    $region10: #{basic_conv2d.1} parent=5 // pred_check_branch
      %151 = sbr.rel (%p148) target = $region12
    $region11: #{basic_conv2d.1} parent=5 // pred_region
      %s152 = ssub.s32 %s9, 1
      // Predicated region
      $region13: #{basic_conv2d.1} parent=11 // pred_check
        %p153 = pneg %p84
      $region14: #{basic_conv2d.1} parent=11 // pred_check_branch
        %155 = sbr.rel (%p153) target = $region16
      $region15: #{basic_conv2d.1} parent=11 // pred_region
        %s156 = smul.u32 16, %s21
        %p157 = scmp.lt.s32.totalorder %s156, 15
        %s158 = scalar_select %p157, %s156, 15
        %p159 = scmp.lt.s32.totalorder %s20, 0
        %s160 = scalar_select %p159, %s20, 0
        %s161 = sadd.s32 %s160, %s158
        %s162 = smul.addr %s161, 8
        %s163 = scalar_lea.vmem %s1, %s162
        %s164 = smul.u32 16, %s21
      $region16: #{basic_conv2d.1} parent=11 // pred_fallthru
        _
      // Predicated region
      $region17: #{basic_conv2d.1} parent=11 // pred_check
        %p165 = pneg %p110
      $region18: #{basic_conv2d.1} parent=11 // pred_check_branch
        %167 = sbr.rel (%p165) target = $region20
      $region19: #{basic_conv2d.1} parent=11 // pred_region
        %p168 = scmp.lt.s32.totalorder %s20, 0
        %s169 = scalar_select %p168, %s20, 0
        %s170 = scalar_lea.vmem %s2, %s169
      $region20: #{basic_conv2d.1} parent=11 // pred_fallthru
        _
    $region12: #{basic_conv2d.1} parent=5 // pred_fallthru
      _
    %p171 = scmp.lt.s32.totalorder %s9, 2
    // Predicated region
    $region21: #{basic_conv2d.1} parent=5 // pred_check
      %p172 = pneg %p171
    $region22: #{basic_conv2d.1} parent=5 // pred_check_branch
      %174 = sbr.rel (%p172) target = $region24
    $region23: #{basic_conv2d.1} parent=5 // pred_region
      // Predicated region
      $region25: #{basic_conv2d.1} parent=23 // pred_check
        %p175 = pneg %p50
      $region26: #{basic_conv2d.1} parent=23 // pred_check_branch
        %177 = sbr.rel (%p175) target = $region28
      $region27: #{basic_conv2d.1} parent=23 // pred_region
        %s178 = smul.u32 32, %s16
        %p179 = scmp.lt.s32.totalorder %s178, 63
        %s180 = scalar_select %p179, %s178, 63
        %p181 = scmp.lt.s32.totalorder %s18, 0
        %s182 = scalar_select %p181, %s18, 0
        %s183 = sadd.s32 %s182, %s180
        %s184 = smul.addr %s183, 8
        %s185 = scalar_lea.vmem %s0, %s184
        %s186 = smul.u32 32, %s16
      $region28: #{basic_conv2d.1} parent=23 // pred_fallthru
        _
    $region24: #{basic_conv2d.1} parent=5 // pred_fallthru
      _
    %p187 = scmp.le.s32.totalorder 1, %s9
    %p188 = scmp.lt.s32.totalorder %s9, 3
    %p189 = pnand %p187, %p188
    %p190 = pneg %p189
    // Predicated region
    $region29: #{basic_conv2d.1} parent=5 // pred_check
      _
    $region30: #{basic_conv2d.1} parent=5 // pred_check_branch
      %192 = sbr.rel (%p189) target = $region32
    $region31: #{basic_conv2d.1} parent=5 // pred_region
      %s193 = ssub.s32 %s9, 1
      %s194 = smul.u32 32, %s19
      %p195 = scmp.lt.s32.totalorder %s194, 63
      %s196 = scalar_select %p195, %s194, 63
      %p197 = scmp.lt.s32.totalorder %s21, 0
      %s198 = scalar_select %p197, %s21, 0
      %s199 = sadd.s32 %s198, %s196
      %s200 = smul.addr %s199, 8
      %s201 = scalar_lea.vmem %s0, %s200
      %p202 = pneg %p56
      %p203 = pneg %p53
      %s204 = smul.u32 16, %s21
      %p205 = scmp.lt.s32.totalorder %s204, 15
      %s206 = scalar_select %p205, %s204, 15
      %p207 = scmp.lt.s32.totalorder %s20, 0
      %s208 = scalar_select %p207, %s20, 0
      %s209 = sadd.s32 %s208, %s206
      %s210 = smul.addr %s209, 8
      %s211 = scalar_lea.vmem %s1, %s210
      %p212 = pneg %p84
      %p213 = pneg %p81
      %p214 = scmp.lt.s32.totalorder %s20, 0
      %s215 = scalar_select %p214, %s20, 0
      %s216 = scalar_lea.vmem %s2, %s215
      %p217 = pneg %p110
      %p218 = pneg %p107
      %p219 = pneg %p138
      %p220 = pneg %p135
      %s221 = smul.u32 32, %s19
      %p222 = scmp.lt.s32.totalorder %s221, 63
      %s223 = scalar_select %p222, %s221, 63
      %p224 = scmp.lt.s32.totalorder %s20, 0
      %s225 = scalar_select %p224, %s20, 0
      %s226 = sadd.s32 %s225, %s223
      %s227 = smul.addr %s226, 8
      %s228 = scalar_lea.vmem %s3, %s227
      %s229 = smul.u32 32, %s19
      %p230 = scmp.lt.s32.totalorder %s229, 63
      %s231 = scalar_select %p230, %s229, 63
      %p232 = scmp.lt.s32.totalorder %s21, 0
      %s233 = scalar_select %p232, %s21, 0
      %s234 = sadd.s32 %s233, %s231
      %s235 = smul.addr %s234, 8
      %s236 = scalar_lea.vmem %s0, %s235
      %s237 = smul.u32 32, %s19
      %s238 = smul.u32 16, %s21
      %p239 = scmp.lt.s32.totalorder %s238, 15
      %s240 = scalar_select %p239, %s238, 15
      %p241 = scmp.lt.s32.totalorder %s20, 0
      %s242 = scalar_select %p241, %s20, 0
      %s243 = sadd.s32 %s242, %s240
      %s244 = smul.addr %s243, 8
      %s245 = scalar_lea.vmem %s1, %s244
      %s246 = smul.u32 16, %s21
      %p247 = scmp.lt.s32.totalorder %s20, 0
      %s248 = scalar_select %p247, %s20, 0
      %s249 = scalar_lea.vmem %s2, %s248
      %s250 = smul.u32 32, %s19
      %p251 = scmp.lt.s32.totalorder %s250, 63
      %s252 = scalar_select %p251, %s250, 63
      %p253 = scmp.lt.s32.totalorder %s20, 0
      %s254 = scalar_select %p253, %s20, 0
      %s255 = sadd.s32 %s254, %s252
      %s256 = smul.addr %s255, 8
      %s257 = scalar_lea.vmem %s3, %s256
      %s258 = smul.u32 32, %s19
      %p259 = scmp.eq.s32.totalorder %s21, 0
      // Predicated region
      $region33: #{basic_conv2d.1} parent=31 // pred_check
        %p260 = pneg %p259
      $region34: #{basic_conv2d.1} parent=31 // pred_check_branch
        %262 = sbr.rel (%p260) target = $region36
      $region35: #{basic_conv2d.1} parent=31 // pred_region
        %263 = vst [vmem:[#allocation2] sm:$0xff] 0.0
        %264 = vst [vmem:[#allocation2 + $0x8] sm:$0xff] 0.0
        %265 = vst [vmem:[#allocation2 + $0x10] sm:$0xff] 0.0
        %266 = vst [vmem:[#allocation2 + $0x18] sm:$0xff] 0.0
        %267 = vst [vmem:[#allocation2 + $0x20] sm:$0xff] 0.0
        %268 = vst [vmem:[#allocation2 + $0x28] sm:$0xff] 0.0
        %269 = vst [vmem:[#allocation2 + $0x30] sm:$0xff] 0.0
        %270 = vst [vmem:[#allocation2 + $0x38] sm:$0xff] 0.0
        %271 = vst [vmem:[#allocation2 + $0x40] sm:$0xff] 0.0
        %272 = vst [vmem:[#allocation2 + $0x48] sm:$0xff] 0.0
        %273 = vst [vmem:[#allocation2 + $0x50] sm:$0xff] 0.0
        %274 = vst [vmem:[#allocation2 + $0x58] sm:$0xff] 0.0
        %275 = vst [vmem:[#allocation2 + $0x60] sm:$0xff] 0.0
        %276 = vst [vmem:[#allocation2 + $0x68] sm:$0xff] 0.0
        %277 = vst [vmem:[#allocation2 + $0x70] sm:$0xff] 0.0
        %278 = vst [vmem:[#allocation2 + $0x78] sm:$0xff] 0.0
        %279 = vst [vmem:[#allocation2 + $0x80] sm:$0xff] 0.0
        %280 = vst [vmem:[#allocation2 + $0x88] sm:$0xff] 0.0
        %281 = vst [vmem:[#allocation2 + $0x90] sm:$0xff] 0.0
        %282 = vst [vmem:[#allocation2 + $0x98] sm:$0xff] 0.0
        %283 = vst [vmem:[#allocation2 + $0xa0] sm:$0xff] 0.0
        %284 = vst [vmem:[#allocation2 + $0xa8] sm:$0xff] 0.0
        %285 = vst [vmem:[#allocation2 + $0xb0] sm:$0xff] 0.0
        %286 = vst [vmem:[#allocation2 + $0xb8] sm:$0xff] 0.0
        %287 = vst [vmem:[#allocation2 + $0xc0] sm:$0xff] 0.0
        %288 = vst [vmem:[#allocation2 + $0xc8] sm:$0xff] 0.0
        %289 = vst [vmem:[#allocation2 + $0xd0] sm:$0xff] 0.0
        %290 = vst [vmem:[#allocation2 + $0xd8] sm:$0xff] 0.0
        %291 = vst [vmem:[#allocation2 + $0xe0] sm:$0xff] 0.0
        %292 = vst [vmem:[#allocation2 + $0xe8] sm:$0xff] 0.0
        %293 = vst [vmem:[#allocation2 + $0xf0] sm:$0xff] 0.0
        %294 = vst [vmem:[#allocation2 + $0xf8] sm:$0xff] 0.0
      $region36: #{basic_conv2d.1} parent=31 // pred_fallthru
        _
      %v295 = vld [vmem:[#allocation2] sm:$0xff]
      %v296 = vld [vmem:[#allocation2 + $0x8] sm:$0xff]
      %v297 = vld [vmem:[#allocation2 + $0x10] sm:$0xff]
      %v298 = vld [vmem:[#allocation2 + $0x18] sm:$0xff]
      %v299 = vld [vmem:[#allocation2 + $0x20] sm:$0xff]
      %v300 = vld [vmem:[#allocation2 + $0x28] sm:$0xff]
      %v301 = vld [vmem:[#allocation2 + $0x30] sm:$0xff]
      %v302 = vld [vmem:[#allocation2 + $0x38] sm:$0xff]
      %v303 = vld [vmem:[#allocation2 + $0x40] sm:$0xff]
      %v304 = vld [vmem:[#allocation2 + $0x48] sm:$0xff]
      %v305 = vld [vmem:[#allocation2 + $0x50] sm:$0xff]
      %v306 = vld [vmem:[#allocation2 + $0x58] sm:$0xff]
      %v307 = vld [vmem:[#allocation2 + $0x60] sm:$0xff]
      %v308 = vld [vmem:[#allocation2 + $0x68] sm:$0xff]
      %v309 = vld [vmem:[#allocation2 + $0x70] sm:$0xff]
      %v310 = vld [vmem:[#allocation2 + $0x78] sm:$0xff]
      %v311 = vld [vmem:[#allocation2 + $0x80] sm:$0xff]
      %v312 = vld [vmem:[#allocation2 + $0x88] sm:$0xff]
      %v313 = vld [vmem:[#allocation2 + $0x90] sm:$0xff]
      %v314 = vld [vmem:[#allocation2 + $0x98] sm:$0xff]
      %v315 = vld [vmem:[#allocation2 + $0xa0] sm:$0xff]
      %v316 = vld [vmem:[#allocation2 + $0xa8] sm:$0xff]
      %v317 = vld [vmem:[#allocation2 + $0xb0] sm:$0xff]
      %v318 = vld [vmem:[#allocation2 + $0xb8] sm:$0xff]
      %v319 = vld [vmem:[#allocation2 + $0xc0] sm:$0xff]
      %v320 = vld [vmem:[#allocation2 + $0xc8] sm:$0xff]
      %v321 = vld [vmem:[#allocation2 + $0xd0] sm:$0xff]
      %v322 = vld [vmem:[#allocation2 + $0xd8] sm:$0xff]
      %v323 = vld [vmem:[#allocation2 + $0xe0] sm:$0xff]
      %v324 = vld [vmem:[#allocation2 + $0xe8] sm:$0xff]
      %v325 = vld [vmem:[#allocation2 + $0xf0] sm:$0xff]
      %v326 = vld [vmem:[#allocation2 + $0xf8] sm:$0xff]
      %v327 = vld [vmem:[%s236] sm:$0xff]
      %v328 = vld [vmem:[%s236 + $0x8] sm:$0xff]
      %v329 = vld [vmem:[%s236 + $0x10] sm:$0xff]
      %v330 = vld [vmem:[%s236 + $0x18] sm:$0xff]
      %v331 = vld [vmem:[%s236 + $0x20] sm:$0xff]
      %v332 = vld [vmem:[%s236 + $0x28] sm:$0xff]
      %v333 = vld [vmem:[%s236 + $0x30] sm:$0xff]
      %v334 = vld [vmem:[%s236 + $0x38] sm:$0xff]
      %v335 = vld [vmem:[%s236 + $0x40] sm:$0xff]
      %v336 = vld [vmem:[%s236 + $0x48] sm:$0xff]
      %v337 = vld [vmem:[%s236 + $0x50] sm:$0xff]
      %v338 = vld [vmem:[%s236 + $0x58] sm:$0xff]
      %v339 = vld [vmem:[%s236 + $0x60] sm:$0xff]
      %v340 = vld [vmem:[%s236 + $0x68] sm:$0xff]
      %v341 = vld [vmem:[%s236 + $0x70] sm:$0xff]
      %v342 = vld [vmem:[%s236 + $0x78] sm:$0xff]
      %v343 = vld [vmem:[%s236 + $0x80] sm:$0xff]
      %v344 = vld [vmem:[%s236 + $0x88] sm:$0xff]
      %v345 = vld [vmem:[%s236 + $0x90] sm:$0xff]
      %v346 = vld [vmem:[%s236 + $0x98] sm:$0xff]
      %v347 = vld [vmem:[%s236 + $0xa0] sm:$0xff]
      %v348 = vld [vmem:[%s236 + $0xa8] sm:$0xff]
      %v349 = vld [vmem:[%s236 + $0xb0] sm:$0xff]
      %v350 = vld [vmem:[%s236 + $0xb8] sm:$0xff]
      %v351 = vld [vmem:[%s236 + $0xc0] sm:$0xff]
      %v352 = vld [vmem:[%s236 + $0xc8] sm:$0xff]
      %v353 = vld [vmem:[%s236 + $0xd0] sm:$0xff]
      %v354 = vld [vmem:[%s236 + $0xd8] sm:$0xff]
      %v355 = vld [vmem:[%s236 + $0xe0] sm:$0xff]
      %v356 = vld [vmem:[%s236 + $0xe8] sm:$0xff]
      %v357 = vld [vmem:[%s236 + $0xf0] sm:$0xff]
      %v358 = vld [vmem:[%s236 + $0xf8] sm:$0xff]
      %v359 = vld [vmem:[%s245] sm:$0xff]
      %v360 = vld [vmem:[%s245 + $0x8] sm:$0xff]
      %v361 = vld [vmem:[%s245 + $0x10] sm:$0xff]
      %v362 = vld [vmem:[%s245 + $0x18] sm:$0xff]
      %v363 = vld [vmem:[%s245 + $0x20] sm:$0xff]
      %v364 = vld [vmem:[%s245 + $0x28] sm:$0xff]
      %v365 = vld [vmem:[%s245 + $0x30] sm:$0xff]
      %v366 = vld [vmem:[%s245 + $0x38] sm:$0xff]
      %v367 = vld [vmem:[%s245 + $0x40] sm:$0xff]
      %v368 = vld [vmem:[%s245 + $0x48] sm:$0xff]
      %v369 = vld [vmem:[%s245 + $0x50] sm:$0xff]
      %v370 = vld [vmem:[%s245 + $0x58] sm:$0xff]
      %v371 = vld [vmem:[%s245 + $0x60] sm:$0xff]
      %v372 = vld [vmem:[%s245 + $0x68] sm:$0xff]
      %v373 = vld [vmem:[%s245 + $0x70] sm:$0xff]
      %v374 = vld [vmem:[%s245 + $0x78] sm:$0xff]
      %375 = vmatprep.subr.mxu0 0.0
      %376 = vmatpush1.msra.mxu0 %v359
      %377 = vmatprep.subr.mxu0 0.0
      %378 = vmatpush1.msra.mxu0 %v360
      %379 = vmatprep.subr.mxu0 0.0
      %380 = vmatpush1.msra.mxu0 %v361
      %381 = vmatprep.subr.mxu0 0.0
      %382 = vmatpush1.msra.mxu0 %v362
      %383 = vmatprep.subr.mxu0 0.0
      %384 = vmatpush1.msra.mxu0 %v363
      %385 = vmatprep.subr.mxu0 0.0
      %386 = vmatpush1.msra.mxu0 %v364
      %387 = vmatprep.subr.mxu0 0.0
      %388 = vmatpush1.msra.mxu0 %v365
      %389 = vmatprep.subr.mxu0 0.0
      %390 = vmatpush1.msra.mxu0 %v366
      %391 = vmatprep.subr.mxu0 0.0
      %392 = vmatpush1.msra.mxu0 %v367
      %393 = vmatprep.subr.mxu0 0.0
      %394 = vmatpush1.msra.mxu0 %v368
      %395 = vmatprep.subr.mxu0 0.0
      %396 = vmatpush1.msra.mxu0 %v369
      %397 = vmatprep.subr.mxu0 0.0
      %398 = vmatpush1.msra.mxu0 %v370
      %399 = vmatprep.subr.mxu0 0.0
      %400 = vmatpush1.msra.mxu0 %v371
      %401 = vmatprep.subr.mxu0 0.0
      %402 = vmatpush1.msra.mxu0 %v372
      %403 = vmatprep.subr.mxu0 0.0
      %404 = vmatpush1.msra.mxu0 %v373
      %405 = vmatprep.subr.mxu0 0.0
      %406 = vmatpush1.msra.mxu0 %v374
      %407 = vmatprep.subr.mxu0 0.0
      %408 = vmatpush1.msra.mxu0 0.0
      %409 = vmatprep.subr.mxu0 0.0
      %410 = vmatpush1.msra.mxu0 0.0
      %411 = vmatprep.subr.mxu0 0.0
      %412 = vmatpush1.msra.mxu0 0.0
      %413 = vmatprep.subr.mxu0 0.0
      %414 = vmatpush1.msra.mxu0 0.0
      %415 = vmatprep.subr.mxu0 0.0
      %416 = vmatpush1.msra.mxu0 0.0
      %417 = vmatprep.subr.mxu0 0.0
      %418 = vmatpush1.msra.mxu0 0.0
      %419 = vmatprep.subr.mxu0 0.0
      %420 = vmatpush1.msra.mxu0 0.0
      %421 = vmatprep.subr.mxu0 0.0
      %422 = vmatpush1.msra.mxu0 0.0
      %423 = vmatprep.subr.mxu0 0.0
      %424 = vmatpush1.msra.mxu0 0.0
      %425 = vmatprep.subr.mxu0 0.0
      %426 = vmatpush1.msra.mxu0 0.0
      %427 = vmatprep.subr.mxu0 0.0
      %428 = vmatpush1.msra.mxu0 0.0
      %429 = vmatprep.subr.mxu0 0.0
      %430 = vmatpush1.msra.mxu0 0.0
      %431 = vmatprep.subr.mxu0 0.0
      %432 = vmatpush1.msra.mxu0 0.0
      %433 = vmatprep.subr.mxu0 0.0
      %434 = vmatpush1.msra.mxu0 0.0
      %435 = vmatprep.subr.mxu0 0.0
      %436 = vmatpush1.msra.mxu0 0.0
      %437 = vmatprep.subr.mxu0 0.0
      %438 = vmatpush1.msra.mxu0 0.0
      %439 = vmatprep.mubr.f32.mxu0 0.0
      %440 = vmatmul.mubr.f32.gmra.mrb[0].mxu0 %v327
      %v441 = vpop.f32.mrb[0].mxu0
      %v442 = vadd.f32 0.0, %v441
      %v443 = vpop.f32.mrb[0].mxu0
      %444 = vmatprep.mubr.f32.mxu0 0.0
      %445 = vmatmul.mubr.f32.gmra.mrb[0].mxu0 %v328
      %v446 = vpop.f32.mrb[0].mxu0
      %v447 = vadd.f32 0.0, %v446
      %v448 = vpop.f32.mrb[0].mxu0
      %449 = vmatprep.mubr.f32.mxu0 0.0
      %450 = vmatmul.mubr.f32.gmra.mrb[0].mxu0 %v329
      %v451 = vpop.f32.mrb[0].mxu0
      %v452 = vadd.f32 0.0, %v451
      %v453 = vpop.f32.mrb[0].mxu0
      %454 = vmatprep.mubr.f32.mxu0 0.0
      %455 = vmatmul.mubr.f32.gmra.mrb[0].mxu0 %v330
      %v456 = vpop.f32.mrb[0].mxu0
      %v457 = vadd.f32 0.0, %v456
      %v458 = vpop.f32.mrb[0].mxu0
      %459 = vmatprep.mubr.f32.mxu0 0.0
      %460 = vmatmul.mubr.f32.gmra.mrb[0].mxu0 %v331
      %v461 = vpop.f32.mrb[0].mxu0
      %v462 = vadd.f32 0.0, %v461
      %v463 = vpop.f32.mrb[0].mxu0
      %464 = vmatprep.mubr.f32.mxu0 0.0
      %465 = vmatmul.mubr.f32.gmra.mrb[0].mxu0 %v332
      %v466 = vpop.f32.mrb[0].mxu0
      %v467 = vadd.f32 0.0, %v466
      %v468 = vpop.f32.mrb[0].mxu0
      %469 = vmatprep.mubr.f32.mxu0 0.0
      %470 = vmatmul.mubr.f32.gmra.mrb[0].mxu0 %v333
      %v471 = vpop.f32.mrb[0].mxu0
      %v472 = vadd.f32 0.0, %v471
      %v473 = vpop.f32.mrb[0].mxu0
      %474 = vmatprep.mubr.f32.mxu0 0.0
      %475 = vmatmul.mubr.f32.gmra.mrb[0].mxu0 %v334
      %v476 = vpop.f32.mrb[0].mxu0
      %v477 = vadd.f32 0.0, %v476
      %v478 = vpop.f32.mrb[0].mxu0
      %479 = vmatprep.mubr.f32.mxu0 0.0
      %480 = vmatmul.mubr.f32.gmra.mrb[0].mxu0 %v335
      %v481 = vpop.f32.mrb[0].mxu0
      %v482 = vadd.f32 0.0, %v481
      %v483 = vpop.f32.mrb[0].mxu0
      %484 = vmatprep.mubr.f32.mxu0 0.0
      %485 = vmatmul.mubr.f32.gmra.mrb[0].mxu0 %v336
      %v486 = vpop.f32.mrb[0].mxu0
      %v487 = vadd.f32 0.0, %v486
      %v488 = vpop.f32.mrb[0].mxu0
      %489 = vmatprep.mubr.f32.mxu0 0.0
      %490 = vmatmul.mubr.f32.gmra.mrb[0].mxu0 %v337
      %v491 = vpop.f32.mrb[0].mxu0
      %v492 = vadd.f32 0.0, %v491
      %v493 = vpop.f32.mrb[0].mxu0
      %494 = vmatprep.mubr.f32.mxu0 0.0
      %495 = vmatmul.mubr.f32.gmra.mrb[0].mxu0 %v338
      %v496 = vpop.f32.mrb[0].mxu0
      %v497 = vadd.f32 0.0, %v496
      %v498 = vpop.f32.mrb[0].mxu0
      %499 = vmatprep.mubr.f32.mxu0 0.0
      %500 = vmatmul.mubr.f32.gmra.mrb[0].mxu0 %v339
      %v501 = vpop.f32.mrb[0].mxu0
      %v502 = vadd.f32 0.0, %v501
      %v503 = vpop.f32.mrb[0].mxu0
      %504 = vmatprep.mubr.f32.mxu0 0.0
      %505 = vmatmul.mubr.f32.gmra.mrb[0].mxu0 %v340
      %v506 = vpop.f32.mrb[0].mxu0
      %v507 = vadd.f32 0.0, %v506
      %v508 = vpop.f32.mrb[0].mxu0
      %509 = vmatprep.mubr.f32.mxu0 0.0
      %510 = vmatmul.mubr.f32.gmra.mrb[0].mxu0 %v341
      %v511 = vpop.f32.mrb[0].mxu0
      %v512 = vadd.f32 0.0, %v511
      %v513 = vpop.f32.mrb[0].mxu0
      %514 = vmatprep.mubr.f32.mxu0 0.0
      %515 = vmatmul.mubr.f32.gmra.mrb[0].mxu0 %v342
      %v516 = vpop.f32.mrb[0].mxu0
      %v517 = vadd.f32 0.0, %v516
      %v518 = vpop.f32.mrb[0].mxu0
      %519 = vmatprep.mubr.f32.mxu0 0.0
      %520 = vmatmul.mubr.f32.gmra.mrb[0].mxu0 %v343
      %v521 = vpop.f32.mrb[0].mxu0
      %v522 = vadd.f32 0.0, %v521
      %v523 = vpop.f32.mrb[0].mxu0
      %524 = vmatprep.mubr.f32.mxu0 0.0
      %525 = vmatmul.mubr.f32.gmra.mrb[0].mxu0 %v344
      %v526 = vpop.f32.mrb[0].mxu0
      %v527 = vadd.f32 0.0, %v526
      %v528 = vpop.f32.mrb[0].mxu0
      %529 = vmatprep.mubr.f32.mxu0 0.0
      %530 = vmatmul.mubr.f32.gmra.mrb[0].mxu0 %v345
      %v531 = vpop.f32.mrb[0].mxu0
      %v532 = vadd.f32 0.0, %v531
      %v533 = vpop.f32.mrb[0].mxu0
      %534 = vmatprep.mubr.f32.mxu0 0.0
      %535 = vmatmul.mubr.f32.gmra.mrb[0].mxu0 %v346
      %v536 = vpop.f32.mrb[0].mxu0
      %v537 = vadd.f32 0.0, %v536
      %v538 = vpop.f32.mrb[0].mxu0
      %539 = vmatprep.mubr.f32.mxu0 0.0
      %540 = vmatmul.mubr.f32.gmra.mrb[0].mxu0 %v347
      %v541 = vpop.f32.mrb[0].mxu0
      %v542 = vadd.f32 0.0, %v541
      %v543 = vpop.f32.mrb[0].mxu0
      %544 = vmatprep.mubr.f32.mxu0 0.0
      %545 = vmatmul.mubr.f32.gmra.mrb[0].mxu0 %v348
      %v546 = vpop.f32.mrb[0].mxu0
      %v547 = vadd.f32 0.0, %v546
      %v548 = vpop.f32.mrb[0].mxu0
      %549 = vmatprep.mubr.f32.mxu0 0.0
      %550 = vmatmul.mubr.f32.gmra.mrb[0].mxu0 %v349
      %v551 = vpop.f32.mrb[0].mxu0
      %v552 = vadd.f32 0.0, %v551
      %v553 = vpop.f32.mrb[0].mxu0
      %554 = vmatprep.mubr.f32.mxu0 0.0
      %555 = vmatmul.mubr.f32.gmra.mrb[0].mxu0 %v350
      %v556 = vpop.f32.mrb[0].mxu0
      %v557 = vadd.f32 0.0, %v556
      %v558 = vpop.f32.mrb[0].mxu0
      %559 = vmatprep.mubr.f32.mxu0 0.0
      %560 = vmatmul.mubr.f32.gmra.mrb[0].mxu0 %v351
      %v561 = vpop.f32.mrb[0].mxu0
      %v562 = vadd.f32 0.0, %v561
      %v563 = vpop.f32.mrb[0].mxu0
      %564 = vmatprep.mubr.f32.mxu0 0.0
      %565 = vmatmul.mubr.f32.gmra.mrb[0].mxu0 %v352
      %v566 = vpop.f32.mrb[0].mxu0
      %v567 = vadd.f32 0.0, %v566
      %v568 = vpop.f32.mrb[0].mxu0
      %569 = vmatprep.mubr.f32.mxu0 0.0
      %570 = vmatmul.mubr.f32.gmra.mrb[0].mxu0 %v353
      %v571 = vpop.f32.mrb[0].mxu0
      %v572 = vadd.f32 0.0, %v571
      %v573 = vpop.f32.mrb[0].mxu0
      %574 = vmatprep.mubr.f32.mxu0 0.0
      %575 = vmatmul.mubr.f32.gmra.mrb[0].mxu0 %v354
      %v576 = vpop.f32.mrb[0].mxu0
      %v577 = vadd.f32 0.0, %v576
      %v578 = vpop.f32.mrb[0].mxu0
      %579 = vmatprep.mubr.f32.mxu0 0.0
      %580 = vmatmul.mubr.f32.gmra.mrb[0].mxu0 %v355
      %v581 = vpop.f32.mrb[0].mxu0
      %v582 = vadd.f32 0.0, %v581
      %v583 = vpop.f32.mrb[0].mxu0
      %584 = vmatprep.mubr.f32.mxu0 0.0
      %585 = vmatmul.mubr.f32.gmra.mrb[0].mxu0 %v356
      %v586 = vpop.f32.mrb[0].mxu0
      %v587 = vadd.f32 0.0, %v586
      %v588 = vpop.f32.mrb[0].mxu0
      %589 = vmatprep.mubr.f32.mxu0 0.0
      %590 = vmatmul.mubr.f32.gmra.mrb[0].mxu0 %v357
      %v591 = vpop.f32.mrb[0].mxu0
      %v592 = vadd.f32 0.0, %v591
      %v593 = vpop.f32.mrb[0].mxu0
      %594 = vmatprep.mubr.f32.mxu0 0.0
      %595 = vmatmul.mubr.f32.gmra.mrb[0].mxu0 %v358
      %v596 = vpop.f32.mrb[0].mxu0
      %v597 = vadd.f32 0.0, %v596
      %v598 = vpop.f32.mrb[0].mxu0
      %599 = vdwg.mxu0
      %v600 = vadd.f32 %v295, %v442
      %v601 = vadd.f32 %v296, %v447
      %v602 = vadd.f32 %v297, %v452
      %v603 = vadd.f32 %v298, %v457
      %v604 = vadd.f32 %v299, %v462
      %v605 = vadd.f32 %v300, %v467
      %v606 = vadd.f32 %v301, %v472
      %v607 = vadd.f32 %v302, %v477
      %v608 = vadd.f32 %v303, %v482
      %v609 = vadd.f32 %v304, %v487
      %v610 = vadd.f32 %v305, %v492
      %v611 = vadd.f32 %v306, %v497
      %v612 = vadd.f32 %v307, %v502
      %v613 = vadd.f32 %v308, %v507
      %v614 = vadd.f32 %v309, %v512
      %v615 = vadd.f32 %v310, %v517
      %v616 = vadd.f32 %v311, %v522
      %v617 = vadd.f32 %v312, %v527
      %v618 = vadd.f32 %v313, %v532
      %v619 = vadd.f32 %v314, %v537
      %v620 = vadd.f32 %v315, %v542
      %v621 = vadd.f32 %v316, %v547
      %v622 = vadd.f32 %v317, %v552
      %v623 = vadd.f32 %v318, %v557
      %v624 = vadd.f32 %v319, %v562
      %v625 = vadd.f32 %v320, %v567
      %v626 = vadd.f32 %v321, %v572
      %v627 = vadd.f32 %v322, %v577
      %v628 = vadd.f32 %v323, %v582
      %v629 = vadd.f32 %v324, %v587
      %v630 = vadd.f32 %v325, %v592
      %v631 = vadd.f32 %v326, %v597
      %632 = vst [vmem:[#allocation2] sm:$0xff] %v600
      %633 = vst [vmem:[#allocation2 + $0x8] sm:$0xff] %v601
      %634 = vst [vmem:[#allocation2 + $0x10] sm:$0xff] %v602
      %635 = vst [vmem:[#allocation2 + $0x18] sm:$0xff] %v603
      %636 = vst [vmem:[#allocation2 + $0x20] sm:$0xff] %v604
      %637 = vst [vmem:[#allocation2 + $0x28] sm:$0xff] %v605
      %638 = vst [vmem:[#allocation2 + $0x30] sm:$0xff] %v606
      %639 = vst [vmem:[#allocation2 + $0x38] sm:$0xff] %v607
      %640 = vst [vmem:[#allocation2 + $0x40] sm:$0xff] %v608
      %641 = vst [vmem:[#allocation2 + $0x48] sm:$0xff] %v609
      %642 = vst [vmem:[#allocation2 + $0x50] sm:$0xff] %v610
      %643 = vst [vmem:[#allocation2 + $0x58] sm:$0xff] %v611
      %644 = vst [vmem:[#allocation2 + $0x60] sm:$0xff] %v612
      %645 = vst [vmem:[#allocation2 + $0x68] sm:$0xff] %v613
      %646 = vst [vmem:[#allocation2 + $0x70] sm:$0xff] %v614
      %647 = vst [vmem:[#allocation2 + $0x78] sm:$0xff] %v615
      %648 = vst [vmem:[#allocation2 + $0x80] sm:$0xff] %v616
      %649 = vst [vmem:[#allocation2 + $0x88] sm:$0xff] %v617
      %650 = vst [vmem:[#allocation2 + $0x90] sm:$0xff] %v618
      %651 = vst [vmem:[#allocation2 + $0x98] sm:$0xff] %v619
      %652 = vst [vmem:[#allocation2 + $0xa0] sm:$0xff] %v620
      %653 = vst [vmem:[#allocation2 + $0xa8] sm:$0xff] %v621
      %654 = vst [vmem:[#allocation2 + $0xb0] sm:$0xff] %v622
      %655 = vst [vmem:[#allocation2 + $0xb8] sm:$0xff] %v623
      %656 = vst [vmem:[#allocation2 + $0xc0] sm:$0xff] %v624
      %657 = vst [vmem:[#allocation2 + $0xc8] sm:$0xff] %v625
      %658 = vst [vmem:[#allocation2 + $0xd0] sm:$0xff] %v626
      %659 = vst [vmem:[#allocation2 + $0xd8] sm:$0xff] %v627
      %660 = vst [vmem:[#allocation2 + $0xe0] sm:$0xff] %v628
      %661 = vst [vmem:[#allocation2 + $0xe8] sm:$0xff] %v629
      %662 = vst [vmem:[#allocation2 + $0xf0] sm:$0xff] %v630
      %663 = vst [vmem:[#allocation2 + $0xf8] sm:$0xff] %v631
      // Predicated region
      $region37: #{basic_conv2d.1} parent=31 // pred_check
        %p664 = pneg %p259
      $region38: #{basic_conv2d.1} parent=31 // pred_check_branch
        %666 = sbr.rel (%p664) target = $region40
      $region39: #{basic_conv2d.1} parent=31 // pred_region
        %v667 = vld [vmem:[#allocation2] sm:$0xff]
        %v668 = vld [vmem:[#allocation2 + $0x8] sm:$0xff]
        %v669 = vld [vmem:[#allocation2 + $0x10] sm:$0xff]
        %v670 = vld [vmem:[#allocation2 + $0x18] sm:$0xff]
        %v671 = vld [vmem:[#allocation2 + $0x20] sm:$0xff]
        %v672 = vld [vmem:[#allocation2 + $0x28] sm:$0xff]
        %v673 = vld [vmem:[#allocation2 + $0x30] sm:$0xff]
        %v674 = vld [vmem:[#allocation2 + $0x38] sm:$0xff]
        %v675 = vld [vmem:[#allocation2 + $0x40] sm:$0xff]
        %v676 = vld [vmem:[#allocation2 + $0x48] sm:$0xff]
        %v677 = vld [vmem:[#allocation2 + $0x50] sm:$0xff]
        %v678 = vld [vmem:[#allocation2 + $0x58] sm:$0xff]
        %v679 = vld [vmem:[#allocation2 + $0x60] sm:$0xff]
        %v680 = vld [vmem:[#allocation2 + $0x68] sm:$0xff]
        %v681 = vld [vmem:[#allocation2 + $0x70] sm:$0xff]
        %v682 = vld [vmem:[#allocation2 + $0x78] sm:$0xff]
        %v683 = vld [vmem:[#allocation2 + $0x80] sm:$0xff]
        %v684 = vld [vmem:[#allocation2 + $0x88] sm:$0xff]
        %v685 = vld [vmem:[#allocation2 + $0x90] sm:$0xff]
        %v686 = vld [vmem:[#allocation2 + $0x98] sm:$0xff]
        %v687 = vld [vmem:[#allocation2 + $0xa0] sm:$0xff]
        %v688 = vld [vmem:[#allocation2 + $0xa8] sm:$0xff]
        %v689 = vld [vmem:[#allocation2 + $0xb0] sm:$0xff]
        %v690 = vld [vmem:[#allocation2 + $0xb8] sm:$0xff]
        %v691 = vld [vmem:[#allocation2 + $0xc0] sm:$0xff]
        %v692 = vld [vmem:[#allocation2 + $0xc8] sm:$0xff]
        %v693 = vld [vmem:[#allocation2 + $0xd0] sm:$0xff]
        %v694 = vld [vmem:[#allocation2 + $0xd8] sm:$0xff]
        %v695 = vld [vmem:[#allocation2 + $0xe0] sm:$0xff]
        %v696 = vld [vmem:[#allocation2 + $0xe8] sm:$0xff]
        %v697 = vld [vmem:[#allocation2 + $0xf0] sm:$0xff]
        %v698 = vld [vmem:[#allocation2 + $0xf8] sm:$0xff]
        %v699 = vld [vmem:[%s249] sm:$0x1]
        %v701 = vlaneseq
        %v702 = vshrl.u32 %v701, 7
        %v703 = vsub.s32 0, %v702
        %v704 = vrot.slane %v699, %v703
        %v706 = vadd.f32 %v667, %v704
        %v707 = vadd.f32 %v668, %v704
        %v708 = vadd.f32 %v669, %v704
        %v709 = vadd.f32 %v670, %v704
        %v710 = vadd.f32 %v671, %v704
        %v711 = vadd.f32 %v672, %v704
        %v712 = vadd.f32 %v673, %v704
        %v713 = vadd.f32 %v674, %v704
        %v714 = vadd.f32 %v675, %v704
        %v715 = vadd.f32 %v676, %v704
        %v716 = vadd.f32 %v677, %v704
        %v717 = vadd.f32 %v678, %v704
        %v718 = vadd.f32 %v679, %v704
        %v719 = vadd.f32 %v680, %v704
        %v720 = vadd.f32 %v681, %v704
        %v721 = vadd.f32 %v682, %v704
        %v722 = vadd.f32 %v683, %v704
        %v723 = vadd.f32 %v684, %v704
        %v724 = vadd.f32 %v685, %v704
        %v725 = vadd.f32 %v686, %v704
        %v726 = vadd.f32 %v687, %v704
        %v727 = vadd.f32 %v688, %v704
        %v728 = vadd.f32 %v689, %v704
        %v729 = vadd.f32 %v690, %v704
        %v730 = vadd.f32 %v691, %v704
        %v731 = vadd.f32 %v692, %v704
        %v732 = vadd.f32 %v693, %v704
        %v733 = vadd.f32 %v694, %v704
        %v734 = vadd.f32 %v695, %v704
        %v735 = vadd.f32 %v696, %v704
        %v736 = vadd.f32 %v697, %v704
        %v737 = vadd.f32 %v698, %v704
        %v738 = vmax.f32 %v706, 0.0
        %v739 = vmax.f32 %v707, 0.0
        %v740 = vmax.f32 %v708, 0.0
        %v741 = vmax.f32 %v709, 0.0
        %v742 = vmax.f32 %v710, 0.0
        %v743 = vmax.f32 %v711, 0.0
        %v744 = vmax.f32 %v712, 0.0
        %v745 = vmax.f32 %v713, 0.0
        %v746 = vmax.f32 %v714, 0.0
        %v747 = vmax.f32 %v715, 0.0
        %v748 = vmax.f32 %v716, 0.0
        %v749 = vmax.f32 %v717, 0.0
        %v750 = vmax.f32 %v718, 0.0
        %v751 = vmax.f32 %v719, 0.0
        %v752 = vmax.f32 %v720, 0.0
        %v753 = vmax.f32 %v721, 0.0
        %v754 = vmax.f32 %v722, 0.0
        %v755 = vmax.f32 %v723, 0.0
        %v756 = vmax.f32 %v724, 0.0
        %v757 = vmax.f32 %v725, 0.0
        %v758 = vmax.f32 %v726, 0.0
        %v759 = vmax.f32 %v727, 0.0
        %v760 = vmax.f32 %v728, 0.0
        %v761 = vmax.f32 %v729, 0.0
        %v762 = vmax.f32 %v730, 0.0
        %v763 = vmax.f32 %v731, 0.0
        %v764 = vmax.f32 %v732, 0.0
        %v765 = vmax.f32 %v733, 0.0
        %v766 = vmax.f32 %v734, 0.0
        %v767 = vmax.f32 %v735, 0.0
        %v768 = vmax.f32 %v736, 0.0
        %v769 = vmax.f32 %v737, 0.0
        %770 = vst [vmem:[%s257] sm:$0xff] %v738
        %771 = vst [vmem:[%s257 + $0x8] sm:$0xff] %v739
        %772 = vst [vmem:[%s257 + $0x10] sm:$0xff] %v740
        %773 = vst [vmem:[%s257 + $0x18] sm:$0xff] %v741
        %774 = vst [vmem:[%s257 + $0x20] sm:$0xff] %v742
        %775 = vst [vmem:[%s257 + $0x28] sm:$0xff] %v743
        %776 = vst [vmem:[%s257 + $0x30] sm:$0xff] %v744
        %777 = vst [vmem:[%s257 + $0x38] sm:$0xff] %v745
        %778 = vst [vmem:[%s257 + $0x40] sm:$0xff] %v746
        %779 = vst [vmem:[%s257 + $0x48] sm:$0xff] %v747
        %780 = vst [vmem:[%s257 + $0x50] sm:$0xff] %v748
        %781 = vst [vmem:[%s257 + $0x58] sm:$0xff] %v749
        %782 = vst [vmem:[%s257 + $0x60] sm:$0xff] %v750
        %783 = vst [vmem:[%s257 + $0x68] sm:$0xff] %v751
        %784 = vst [vmem:[%s257 + $0x70] sm:$0xff] %v752
        %785 = vst [vmem:[%s257 + $0x78] sm:$0xff] %v753
        %786 = vst [vmem:[%s257 + $0x80] sm:$0xff] %v754
        %787 = vst [vmem:[%s257 + $0x88] sm:$0xff] %v755
        %788 = vst [vmem:[%s257 + $0x90] sm:$0xff] %v756
        %789 = vst [vmem:[%s257 + $0x98] sm:$0xff] %v757
        %790 = vst [vmem:[%s257 + $0xa0] sm:$0xff] %v758
        %791 = vst [vmem:[%s257 + $0xa8] sm:$0xff] %v759
        %792 = vst [vmem:[%s257 + $0xb0] sm:$0xff] %v760
        %793 = vst [vmem:[%s257 + $0xb8] sm:$0xff] %v761
        %794 = vst [vmem:[%s257 + $0xc0] sm:$0xff] %v762
        %795 = vst [vmem:[%s257 + $0xc8] sm:$0xff] %v763
        %796 = vst [vmem:[%s257 + $0xd0] sm:$0xff] %v764
        %797 = vst [vmem:[%s257 + $0xd8] sm:$0xff] %v765
        %798 = vst [vmem:[%s257 + $0xe0] sm:$0xff] %v766
        %799 = vst [vmem:[%s257 + $0xe8] sm:$0xff] %v767
        %800 = vst [vmem:[%s257 + $0xf0] sm:$0xff] %v768
        %801 = vst [vmem:[%s257 + $0xf8] sm:$0xff] %v769
      $region40: #{basic_conv2d.1} parent=31 // pred_fallthru
        _
      %s802 = smul.u32 32, %s19
      %p803 = scmp.lt.s32.totalorder %s802, 63
      %s804 = scalar_select %p803, %s802, 63
      %p805 = scmp.lt.s32.totalorder %s20, 0
      %s806 = scalar_select %p805, %s20, 0
      %s807 = sadd.s32 %s806, %s804
      %s808 = smul.addr %s807, 8
      %s809 = scalar_lea.vmem %s3, %s808
      // Predicated region
      $region41: #{basic_conv2d.1} parent=31 // pred_check
        %p810 = pneg %p135
      $region42: #{basic_conv2d.1} parent=31 // pred_check_branch
        %812 = sbr.rel (%p810) target = $region44
      $region43: #{basic_conv2d.1} parent=31 // pred_region
        %s813 = smul.u32 32, %s19
      $region44: #{basic_conv2d.1} parent=31 // pred_fallthru
        _
    $region32: #{basic_conv2d.1} parent=5 // pred_fallthru
      _
    %p814 = scmp.le.s32.totalorder 2, %s9
    // Predicated region
    $region45: #{basic_conv2d.1} parent=5 // pred_check
      %p815 = pneg %p814
    $region46: #{basic_conv2d.1} parent=5 // pred_check_branch
      %817 = sbr.rel (%p815) target = $region48
    $region47: #{basic_conv2d.1} parent=5 // pred_region
      %s818 = ssub.s32 %s9, 2
      // Predicated region
      $region49: #{basic_conv2d.1} parent=47 // pred_check
        %p819 = pneg %p141
      $region50: #{basic_conv2d.1} parent=47 // pred_check_branch
        %821 = sbr.rel (%p819) target = $region52
      $region51: #{basic_conv2d.1} parent=47 // pred_region
        %s822 = smul.u32 32, %s22
        %p823 = scmp.lt.s32.totalorder %s822, 63
        %s824 = scalar_select %p823, %s822, 63
        %p825 = scmp.lt.s32.totalorder %s23, 0
        %s826 = scalar_select %p825, %s23, 0
        %s827 = sadd.s32 %s826, %s824
        %s828 = smul.addr %s827, 8
        %s829 = scalar_lea.vmem %s3, %s828
      $region52: #{basic_conv2d.1} parent=47 // pred_fallthru
        _
    $region48: #{basic_conv2d.1} parent=5 // pred_fallthru
      _
  $region6: #{basic_conv2d.1} parent=0 // loop_footer
    %s13 = sadd.s32 1, %s9
  $region7: #{basic_conv2d.1} parent=0 // loop_footer_branch
    %8 = sbr.rel target = $region3
  $region8: #{basic_conv2d.1} parent=0 // loop_exit
    _

</llo_original>
